<compile_context>
chip_gen: v6e
topology: v6e:2x2x1
jax: 0.10.0
libtpu: 0.0.40
codegen_flags: <defaults>
</compile_context>

<pallas_src>
import functools

import jax
import jax.numpy as jnp
import numpy as np
from jax.experimental import pallas as pl
from jax.experimental.pallas import tpu as pltpu


def _round_up(x, m):
    return (x + m - 1) // m * m


# ----------------------------- Pallas kernel --------------------------------

def _tree_lstm_kernel(z_ref, cl_ref, cr_ref, w_ref, b_ref, h_out_ref, c_out_ref):
    H = h_out_ref.shape[-1]

    # Single fused MXU matmul: (TB, K) @ (K, 5H) -> (TB, 5H), f32 accumulation.
    z = z_ref[...].astype(jnp.bfloat16)
    pre = jnp.dot(z, w_ref[...], preferred_element_type=jnp.float32)
    pre = pre + b_ref[...]  # one lane-dense (1, 5H) broadcast add

    # Gate non-linearities on the fused block (static, lane-aligned slices).
    sig = jax.nn.sigmoid(pre[:, : 4 * H])   # [i | f_l | f_r | o]
    u = jnp.tanh(pre[:, 4 * H:])            # u

    i   = sig[:, 0 * H: 1 * H]
    f_l = sig[:, 1 * H: 2 * H]
    f_r = sig[:, 2 * H: 3 * H]
    o   = sig[:, 3 * H: 4 * H]

    c = i * u \
        + f_l * cl_ref[...].astype(jnp.float32) \
        + f_r * cr_ref[...].astype(jnp.float32)
    h = o * jnp.tanh(c)

    h_out_ref[...] = h.astype(h_out_ref.dtype)
    c_out_ref[...] = c.astype(c_out_ref.dtype)


# ------------------------------- Wrapper -------------------------------------

def tree_lstm_cell(x, h_l, c_l, h_r, c_r, w, b, *, block_b=128):
    """
    Args:
      x:   (B, input_dim)
      h_l, c_l, h_r, c_r: (B, hidden_dim)
      w:   (input_dim + 2*hidden_dim, 5*hidden_dim)  fused bf16 weights,
           gate order along the output axis: [i, f_l, f_r, o, u]
      b:   (1, 5*hidden_dim)                          fused f32 biases
      block_b: node/batch tile size (rows per grid step).
    Returns:
      (h, c): each (B, hidden_dim), dtype of x.
    """
    B, D = x.shape
    H = c_l.shape[-1]
    K = D + 2 * H
    assert w.shape == (K, 5 * H)
    assert b.shape == (1, 5 * H)

    # Fuse the three matmul operands along the contraction axis.
    z = jnp.concatenate([x, h_l, h_r], axis=-1)          # (B, K)

    # Pad the node/batch axis to a tile multiple (min sublane multiple of 8).
    TB = min(block_b, _round_up(B, 8))
    Bp = _round_up(B, TB)
    if Bp != B:
        pad = ((0, Bp - B), (0, 0))
        z = jnp.pad(z, pad)
        c_l = jnp.pad(c_l, pad)
        c_r = jnp.pad(c_r, pad)

    grid = (Bp // TB,)

    h, c = pl.pallas_call(
        _tree_lstm_kernel,
        out_shape=(jax.ShapeDtypeStruct((Bp, H), x.dtype),
                   jax.ShapeDtypeStruct((Bp, H), x.dtype)),
        grid_spec=pltpu.PrefetchScalarGridSpec(
            num_scalar_prefetch=0,
            grid=grid,
            in_specs=[
                pl.BlockSpec((TB, K), lambda n: (n, 0)),        # z (streamed)
                pl.BlockSpec((TB, H), lambda n: (n, 0)),        # c_l (streamed)
                pl.BlockSpec((TB, H), lambda n: (n, 0)),        # c_r (streamed)
                pl.BlockSpec((K, 5 * H), lambda n: (0, 0)),     # W  (VMEM-resident)
                pl.BlockSpec((1, 5 * H), lambda n: (0, 0)),     # b  (VMEM-resident)
            ],
            out_specs=[
                pl.BlockSpec((TB, H), lambda n: (n, 0)),
                pl.BlockSpec((TB, H), lambda n: (n, 0)),
            ],
        ),
        compiler_params=pltpu.CompilerParams(
            dimension_semantics=("parallel",),
        ),
    )(z, c_l, c_r, w, b)

    if Bp != B:
        h = h[:B]
        c = c[:B]
    return h, c


# --------------------------- Parameter construction --------------------------

def init_params(key, input_dim, hidden_dim, dtype=jnp.float32):
    """Synthetic parameters for the 15 nn.Linear layers.

    Returns:
      w_fused: (D + 2H, 5H) bf16 — per gate g, rows [0,D) are W_x_g^T,
               rows [D,D+H) are U_l_g^T, rows [D+H,D+2H) are U_r_g^T.
      b_fused: (1, 5H) f32 — per gate, the sum of the 3 contributing biases.
      ref_params: per-gate f32 weights (wx, ul, ur, b) for the pure-JAX check.
    """
    keys = jax.random.split(key, 30)
    k = iter(keys)

    def lin(in_dim, out_dim):
        # nn.Linear weight (out, in) stored pre-transposed as (in, out).
        w = jax.random.normal(next(k), (in_dim, out_dim), dtype) * 0.1
        bb = jax.random.normal(next(k), (out_dim,), dtype) * 0.1
        return w, bb

    wx_g, ul_g, ur_g, b_g = [], [], [], []
    for _ in range(5):  # i, f_l, f_r, o, u
        w_x, b_x = lin(input_dim, hidden_dim)
        u_l, b_l = lin(hidden_dim, hidden_dim)
        u_r, b_r = lin(hidden_dim, hidden_dim)
        wx_g.append(w_x)
        ul_g.append(u_l)
        ur_g.append(u_r)
        b_g.append(b_x + b_l + b_r)

    w_fused = jnp.concatenate(
        [jnp.concatenate([wx_g[g], ul_g[g], ur_g[g]], axis=0) for g in range(5)],
        axis=1)                                            # (D + 2H, 5H)
    b_fused = jnp.concatenate(b_g, axis=0)[None, :]        # (1, 5H)

    ref_params = (jnp.stack(wx_g), jnp.stack(ul_g), jnp.stack(ur_g),
                  jnp.stack(b_g)[:, None, :])
    return w_fused.astype(jnp.bfloat16), b_fused.astype(jnp.float32), ref_params


# --------------------------- Pure-JAX reference -------------------------------

def tree_lstm_ref(x, h_l, c_l, h_r, c_r, wx, ul, ur, b):
    pre = [x @ wx[g] + h_l @ ul[g] + h_r @ ur[g] + b[g] for g in range(5)]
    i, f_l, f_r, o = [jax.nn.sigmoid(p) for p in pre[:4]]
    u = jnp.tanh(pre[4])
    c = i * u + f_l * c_l + f_r * c_r
    h = o * jnp.tanh(c)
    return h, c


# ----------------------------------- Main -------------------------------------

if __name__ == "__main__":
    B, INPUT_DIM, HIDDEN_DIM = 24, 64, 128
    dtype = jnp.float32

    key = jax.random.PRNGKey(0)
    k_par, k_x, k_hl, k_cl, k_hr, k_cr = jax.random.split(key, 6)

    w_fused, b_fused, (wx, ul, ur, b_ref) = init_params(k_par, INPUT_DIM, HIDDEN_DIM, dtype)

    x   = jax.random.normal(k_x,  (B, INPUT_DIM), dtype)
    h_l = jax.random.normal(k_hl, (B, HIDDEN_DIM), dtype)
    c_l = jax.random.normal(k_cl, (B, HIDDEN_DIM), dtype)
    h_r = jax.random.normal(k_hr, (B, HIDDEN_DIM), dtype)
    c_r = jax.random.normal(k_cr, (B, HIDDEN_DIM), dtype)

    # block_b=8 at this small batch gives a 3-step grid, exercising the
    # weight-resident pipelining; at real node counts use block_b=128/256.
    kernel_fn = jax.jit(functools.partial(tree_lstm_cell, block_b=8))
    h, c = jax.block_until_ready(kernel_fn(x, h_l, c_l, h_r, c_r, w_fused, b_fused))

    h_exp, c_exp = tree_lstm_ref(x, h_l, c_l, h_r, c_r, wx, ul, ur, b_ref)

    # bf16 weights / LHS -> relaxed tolerances vs the f32 reference.
    np.testing.assert_allclose(np.asarray(h), np.asarray(h_exp), rtol=3e-2, atol=3e-2)
    np.testing.assert_allclose(np.asarray(c), np.asarray(c_exp), rtol=3e-2, atol=3e-2)

    print("KERNEL_OK")
</pallas_src>

<mosaic_0001>
module attributes {stable_mosaic.version = 11 : i64} {
  func.func @_tree_lstm_kernel(%arg0: i32, %arg1: memref<8x320xf32, #tpu.memory_space<vmem>>, %arg2: memref<8x128xf32, #tpu.memory_space<vmem>>, %arg3: memref<8x128xf32, #tpu.memory_space<vmem>>, %arg4: memref<320x640xbf16, #tpu.memory_space<vmem>>, %arg5: memref<1x640xf32, #tpu.memory_space<vmem>>, %arg6: memref<8x128xf32, #tpu.memory_space<vmem>>, %arg7: memref<8x128xf32, #tpu.memory_space<vmem>>) attributes {dimension_semantics = [#tpu.dimension_semantics<parallel>], iteration_bounds = array<i64: 3>, scalar_prefetch = 0 : i64, scratch_operands = 0 : i64, tpu.core_type = #tpu.core_type<tc>, window_params = [{transform_indices = @transform_0, window_bounds = array<i64: 8, 320>}, {transform_indices = @transform_1, window_bounds = array<i64: 8, 128>}, {transform_indices = @transform_2, window_bounds = array<i64: 8, 128>}, {pipeline_mode = #tpu.pipeline_mode<synchronous>, transform_indices = @transform_3, window_bounds = array<i64: 320, 640>}, {pipeline_mode = #tpu.pipeline_mode<synchronous>, transform_indices = @transform_4, window_bounds = array<i64: 1, 640>}, {transform_indices = @transform_5, window_bounds = array<i64: 8, 128>}, {transform_indices = @transform_6, window_bounds = array<i64: 8, 128>}]} {
    %c0 = arith.constant 0 : index
    %c0_0 = arith.constant 0 : index
    %0 = vector.load %arg1[%c0, %c0_0] : memref<8x320xf32, #tpu.memory_space<vmem>>, vector<8x320xf32>
    %1 = arith.truncf %0 : vector<8x320xf32> to vector<8x320xbf16>
    %c0_1 = arith.constant 0 : index
    %c0_2 = arith.constant 0 : index
    %2 = vector.load %arg4[%c0_1, %c0_2] : memref<320x640xbf16, #tpu.memory_space<vmem>>, vector<320x640xbf16>
    %cst = arith.constant dense<0.000000e+00> : vector<8x640xf32>
    %3 = tpu.matmul %1, %2, %cst {dimension_numbers = #tpu.dot_dimension_numbers<[1], [0], [0], [1], [0, 0, 1, 1], [], []>} : vector<8x320xbf16>, vector<320x640xbf16>, vector<8x640xf32> -> vector<8x640xf32>
    %c0_3 = arith.constant 0 : index
    %c0_4 = arith.constant 0 : index
    %4 = vector.load %arg5[%c0_3, %c0_4] : memref<1x640xf32, #tpu.memory_space<vmem>>, vector<1x640xf32>
    %5 = vector.broadcast %4 : vector<1x640xf32> to vector<8x640xf32>
    %6 = arith.addf %3, %5 : vector<8x640xf32>
    %7 = vector.extract_strided_slice %6 {offsets = [0, 0], sizes = [8, 512], strides = [1, 1]} : vector<8x640xf32> to vector<8x512xf32>
    %8 = arith.negf %7 : vector<8x512xf32>
    %9 = math.exp %8 : vector<8x512xf32>
    %cst_5 = arith.constant 1.000000e+00 : f32
    %10 = vector.broadcast %cst_5 : f32 to vector<8x512xf32>
    %11 = arith.addf %10, %9 : vector<8x512xf32>
    %12 = arith.divf %10, %11 : vector<8x512xf32>
    %13 = vector.extract_strided_slice %6 {offsets = [0, 512], sizes = [8, 128], strides = [1, 1]} : vector<8x640xf32> to vector<8x128xf32>
    %14 = math.tanh %13 : vector<8x128xf32>
    %15 = vector.extract_strided_slice %12 {offsets = [0, 0], sizes = [8, 128], strides = [1, 1]} : vector<8x512xf32> to vector<8x128xf32>
    %16 = vector.extract_strided_slice %12 {offsets = [0, 128], sizes = [8, 128], strides = [1, 1]} : vector<8x512xf32> to vector<8x128xf32>
    %17 = vector.extract_strided_slice %12 {offsets = [0, 256], sizes = [8, 128], strides = [1, 1]} : vector<8x512xf32> to vector<8x128xf32>
    %18 = vector.extract_strided_slice %12 {offsets = [0, 384], sizes = [8, 128], strides = [1, 1]} : vector<8x512xf32> to vector<8x128xf32>
    %19 = arith.mulf %15, %14 : vector<8x128xf32>
    %c0_6 = arith.constant 0 : index
    %c0_7 = arith.constant 0 : index
    %20 = vector.load %arg2[%c0_6, %c0_7] : memref<8x128xf32, #tpu.memory_space<vmem>>, vector<8x128xf32>
    %21 = arith.mulf %16, %20 : vector<8x128xf32>
    %22 = arith.addf %19, %21 : vector<8x128xf32>
    %c0_8 = arith.constant 0 : index
    %c0_9 = arith.constant 0 : index
    %23 = vector.load %arg3[%c0_8, %c0_9] : memref<8x128xf32, #tpu.memory_space<vmem>>, vector<8x128xf32>
    %24 = arith.mulf %17, %23 : vector<8x128xf32>
    %25 = arith.addf %22, %24 : vector<8x128xf32>
    %26 = math.tanh %25 : vector<8x128xf32>
    %27 = arith.mulf %18, %26 : vector<8x128xf32>
    %c0_10 = arith.constant 0 : index
    %c0_11 = arith.constant 0 : index
    %28 = vector.load %arg6[%c0_10, %c0_11] : memref<8x128xf32, #tpu.memory_space<vmem>>, vector<8x128xf32>
    tpu.vector_store %arg6[%c0_10, %c0_11], %27 {strides = array<i32>} : memref<8x128xf32, #tpu.memory_space<vmem>>, vector<8x128xf32>,
    %c0_12 = arith.constant 0 : index
    %c0_13 = arith.constant 0 : index
    %29 = vector.load %arg7[%c0_12, %c0_13] : memref<8x128xf32, #tpu.memory_space<vmem>>, vector<8x128xf32>
    tpu.vector_store %arg7[%c0_12, %c0_13], %25 {strides = array<i32>} : memref<8x128xf32, #tpu.memory_space<vmem>>, vector<8x128xf32>,
    return
  }
  func.func @transform_0(%arg0: i32) -> (i32, i32) {
    %c0_i32 = arith.constant 0 : i32
    %c0_i32_0 = arith.constant 0 : i32
    return %arg0, %c0_i32 : i32, i32
  }
  func.func @transform_1(%arg0: i32) -> (i32, i32) {
    %c0_i32 = arith.constant 0 : i32
    %c0_i32_0 = arith.constant 0 : i32
    return %arg0, %c0_i32 : i32, i32
  }
  func.func @transform_2(%arg0: i32) -> (i32, i32) {
    %c0_i32 = arith.constant 0 : i32
    %c0_i32_0 = arith.constant 0 : i32
    return %arg0, %c0_i32 : i32, i32
  }
  func.func @transform_3(%arg0: i32) -> (i32, i32) {
    %c0_i32 = arith.constant 0 : i32
    %c0_i32_0 = arith.constant 0 : i32
    %c0_i32_1 = arith.constant 0 : i32
    return %c0_i32, %c0_i32_0 : i32, i32
  }
  func.func @transform_4(%arg0: i32) -> (i32, i32) {
    %c0_i32 = arith.constant 0 : i32
    %c0_i32_0 = arith.constant 0 : i32
    %c0_i32_1 = arith.constant 0 : i32
    return %c0_i32, %c0_i32_0 : i32, i32
  }
  func.func @transform_5(%arg0: i32) -> (i32, i32) {
    %c0_i32 = arith.constant 0 : i32
    %c0_i32_0 = arith.constant 0 : i32
    return %arg0, %c0_i32 : i32, i32
  }
  func.func @transform_6(%arg0: i32) -> (i32, i32) {
    %c0_i32 = arith.constant 0 : i32
    %c0_i32_0 = arith.constant 0 : i32
    return %arg0, %c0_i32 : i32, i32
  }
}

</mosaic_0001>

<llo_original>
// kernel: tree_lstm_cell.1
$region0: #{tree_lstm_cell.1}
  #allocation0 [shape = 'u32[]', space=smem, size = 0x4, offset = 0x4, fixed_abs, tag = 'smem constant byte address 0x4 - core index']
  #allocation1 [shape = 'u32[144,128]{1,0:T(1,128)}', space=vmem, size = 0x12000, scoped, tag = 'internal scratch']
  %s0 = inlined_call_operand.vmem [shape: f32[24,320], index: 0, kind: input, shape index: {}]
  %s1 = inlined_call_operand.vmem [shape: f32[24,128], index: 1, kind: input, shape index: {}]
  %s2 = inlined_call_operand.vmem [shape: f32[24,128], index: 2, kind: input, shape index: {}]
  %s3 = inlined_call_operand.hbm [shape: bf16[320,640], index: 3, kind: input, shape index: {}]
  %s4 = inlined_call_operand.vmem [shape: f32[1,640], index: 4, kind: input, shape index: {}]
  %s5 = inlined_call_operand.hbm [shape: f32[24,128], index: 5, kind: output, shape index: {0}]
  %s6 = inlined_call_operand.hbm [shape: f32[24,128], index: 6, kind: output, shape index: {1}]
  %7 = xla_tuple %s5, %s6
  %s8 = sld [smem:[#allocation0]]
  $region65: #{tree_lstm_cell.1} parent=0
    _
  %s10 = ssub.s32 1, %s8
  %s11 = scalar_select 0, %s10, %s8
  $region1: #{tree_lstm_cell.1} parent=0
    #allocation2 [shape = 'u8[409600]{0}', space=vmem, size = 0x64000, scoped, tag = 'input window, operand 3, single buffered']
    #allocation3 [shape = 's32[2]{0}', space=sflag, size = 0x8, scoped, tag = 'scoped memory for tree_lstm_cell.1']
    #allocation4 [shape = 's32[2]{0}', space=sflag, size = 0x8, scoped, tag = 'scoped memory for tree_lstm_cell.1']
    #allocation5 [shape = 'u8[8192]{0}', space=vmem, size = 0x2000, scoped, tag = 'output window, operand 0']
    #allocation6 [shape = 'u8[8192]{0}', space=vmem, size = 0x2000, scoped, tag = 'output window, operand 1']
    #allocation7 [shape = 's32[2]{0}', space=sflag, size = 0x8, scoped, tag = 'scoped memory for tree_lstm_cell.1']
    %12 = vsyncpa [#allocation3], 0
    %13 = vsyncpa [#allocation4], 0
    %s14 = scalar_lea.sflag [#allocation4], 1
    %15 = vsyncpa %s14, 0
    %16 = vsyncpa [#allocation7], 0
    %s17 = scalar_lea.sflag [#allocation7], 1
    %18 = vsyncpa %s17, 0
    loop: start=0, step=1, limit=5
    $region2: #{tree_lstm_cell.1} parent=1 // loop_pre_header
      _
    $region3: #{tree_lstm_cell.1} parent=1 // loop_header
      %s20 = sphi 0, %s24
      %p21 = scmp.ge.s32.totalorder %s20, 5
      %s30 = sphi 0, %s32
      %s33 = sphi 0, %s30
      %s34 = sphi 0, %s33
      %s50 = sphi 0, %s34
      %s56 = sphi 0, %s58
      %s59 = sphi 0, %s56
      %s60 = sphi 0, %s59
      %s76 = sphi 0, %s60
      %s82 = sphi 0, %s84
      %s85 = sphi 0, %s82
      %s86 = sphi 0, %s85
      %s102 = sphi 0, %s86
      %s106 = sphi 0, %s106
      %s108 = sphi 0, %s106
      %s109 = sphi 0, %s108
      %s123 = sphi 0, %s109
      %s127 = sphi 0, %s127
      %s129 = sphi 0, %s127
      %s130 = sphi 0, %s129
      %s144 = sphi 0, %s130
      %s150 = sphi 0, %s152
      %s153 = sphi 0, %s150
      %s154 = sphi 0, %s153
      %s170 = sphi 0, %s154
      %s176 = sphi 0, %s178
      %s179 = sphi 0, %s176
      %s180 = sphi 0, %s179
      %s196 = sphi 0, %s180
    $region4: #{tree_lstm_cell.1} parent=1 // loop_header_branch
      %23 = sbr.rel (%p21) target = $region8
    $region5: #{tree_lstm_cell.1} parent=1 // loop_body
      %s25 = ssub.s32 %s20, 1
      %s26 = ssub.s32 %s20, 2
      %s27 = sadd.s32 %s20, 1
      %s28 = ssub.s32 %s20, %s27
      %p29 = scmp.eq.s32.totalorder %s28, 0
      %s31 = sadd.s32 %s30, 1
      %s32 = scalar_select %p29, %s30, %s31
      %p35 = pneg %p29
      %p36 = scmp.eq.s32.totalorder %s20, 2
      %p37 = por %p35, %p36
      %p38 = scmp.ne.s32.totalorder %s30, %s33
      %p39 = scmp.eq.s32.totalorder %s20, 0
      %p40 = por %p38, %p39
      %p41 = scmp.ne.s32.totalorder %s30, %s33
      %p42 = scmp.eq.s32.totalorder %s25, 2
      %p43 = por %p41, %p42
      %p44 = scmp.ne.s32.totalorder %s33, %s34
      %p45 = scmp.eq.s32.totalorder %s25, 0
      %p46 = por %p44, %p45
      %p47 = scmp.ne.s32.totalorder %s33, %s34
      %p48 = scmp.eq.s32.totalorder %s26, 2
      %p49 = por %p47, %p48
      %p51 = scmp.ne.s32.totalorder %s34, %s50
      %p52 = scmp.eq.s32.totalorder %s26, 0
      %p53 = por %p51, %p52
      %s54 = ssub.s32 %s20, %s27
      %p55 = scmp.eq.s32.totalorder %s54, 0
      %s57 = sadd.s32 %s56, 1
      %s58 = scalar_select %p55, %s56, %s57
      %p61 = pneg %p55
      %p62 = scmp.eq.s32.totalorder %s20, 2
      %p63 = por %p61, %p62
      %p64 = scmp.ne.s32.totalorder %s56, %s59
      %p65 = scmp.eq.s32.totalorder %s20, 0
      %p66 = por %p64, %p65
      %p67 = scmp.ne.s32.totalorder %s56, %s59
      %p68 = scmp.eq.s32.totalorder %s25, 2
      %p69 = por %p67, %p68
      %p70 = scmp.ne.s32.totalorder %s59, %s60
      %p71 = scmp.eq.s32.totalorder %s25, 0
      %p72 = por %p70, %p71
      %p73 = scmp.ne.s32.totalorder %s59, %s60
      %p74 = scmp.eq.s32.totalorder %s26, 2
      %p75 = por %p73, %p74
      %p77 = scmp.ne.s32.totalorder %s60, %s76
      %p78 = scmp.eq.s32.totalorder %s26, 0
      %p79 = por %p77, %p78
      %s80 = ssub.s32 %s20, %s27
      %p81 = scmp.eq.s32.totalorder %s80, 0
      %s83 = sadd.s32 %s82, 1
      %s84 = scalar_select %p81, %s82, %s83
      %p87 = pneg %p81
      %p88 = scmp.eq.s32.totalorder %s20, 2
      %p89 = por %p87, %p88
      %p90 = scmp.ne.s32.totalorder %s82, %s85
      %p91 = scmp.eq.s32.totalorder %s20, 0
      %p92 = por %p90, %p91
      %p93 = scmp.ne.s32.totalorder %s82, %s85
      %p94 = scmp.eq.s32.totalorder %s25, 2
      %p95 = por %p93, %p94
      %p96 = scmp.ne.s32.totalorder %s85, %s86
      %p97 = scmp.eq.s32.totalorder %s25, 0
      %p98 = por %p96, %p97
      %p99 = scmp.ne.s32.totalorder %s85, %s86
      %p100 = scmp.eq.s32.totalorder %s26, 2
      %p101 = por %p99, %p100
      %p103 = scmp.ne.s32.totalorder %s86, %s102
      %p104 = scmp.eq.s32.totalorder %s26, 0
      %p105 = por %p103, %p104
      %s107 = sadd.s32 %s106, 1
      %p110 = scmp.eq.s32.totalorder %s20, 2
      %p111 = scmp.ne.s32.totalorder %s106, %s108
      %p112 = scmp.eq.s32.totalorder %s20, 0
      %p113 = por %p111, %p112
      %p114 = scmp.ne.s32.totalorder %s106, %s108
      %p115 = scmp.eq.s32.totalorder %s25, 2
      %p116 = por %p114, %p115
      %p117 = scmp.ne.s32.totalorder %s108, %s109
      %p118 = scmp.eq.s32.totalorder %s25, 0
      %p119 = por %p117, %p118
      %p120 = scmp.ne.s32.totalorder %s108, %s109
      %p121 = scmp.eq.s32.totalorder %s26, 2
      %p122 = por %p120, %p121
      %p124 = scmp.ne.s32.totalorder %s109, %s123
      %p125 = scmp.eq.s32.totalorder %s26, 0
      %p126 = por %p124, %p125
      %s128 = sadd.s32 %s127, 1
      %p131 = scmp.eq.s32.totalorder %s20, 2
      %p132 = scmp.ne.s32.totalorder %s127, %s129
      %p133 = scmp.eq.s32.totalorder %s20, 0
      %p134 = por %p132, %p133
      %p135 = scmp.ne.s32.totalorder %s127, %s129
      %p136 = scmp.eq.s32.totalorder %s25, 2
      %p137 = por %p135, %p136
      %p138 = scmp.ne.s32.totalorder %s129, %s130
      %p139 = scmp.eq.s32.totalorder %s25, 0
      %p140 = por %p138, %p139
      %p141 = scmp.ne.s32.totalorder %s129, %s130
      %p142 = scmp.eq.s32.totalorder %s26, 2
      %p143 = por %p141, %p142
      %p145 = scmp.ne.s32.totalorder %s130, %s144
      %p146 = scmp.eq.s32.totalorder %s26, 0
      %p147 = por %p145, %p146
      %s148 = ssub.s32 %s20, %s27
      %p149 = scmp.eq.s32.totalorder %s148, 0
      %s151 = sadd.s32 %s150, 1
      %s152 = scalar_select %p149, %s150, %s151
      %p155 = pneg %p149
      %p156 = scmp.eq.s32.totalorder %s20, 2
      %p157 = por %p155, %p156
      %p158 = scmp.ne.s32.totalorder %s150, %s153
      %p159 = scmp.eq.s32.totalorder %s20, 0
      %p160 = por %p158, %p159
      %p161 = scmp.ne.s32.totalorder %s150, %s153
      %p162 = scmp.eq.s32.totalorder %s25, 2
      %p163 = por %p161, %p162
      %p164 = scmp.ne.s32.totalorder %s153, %s154
      %p165 = scmp.eq.s32.totalorder %s25, 0
      %p166 = por %p164, %p165
      %p167 = scmp.ne.s32.totalorder %s153, %s154
      %p168 = scmp.eq.s32.totalorder %s26, 2
      %p169 = por %p167, %p168
      %p171 = scmp.ne.s32.totalorder %s154, %s170
      %p172 = scmp.eq.s32.totalorder %s26, 0
      %p173 = por %p171, %p172
      %s174 = ssub.s32 %s20, %s27
      %p175 = scmp.eq.s32.totalorder %s174, 0
      %s177 = sadd.s32 %s176, 1
      %s178 = scalar_select %p175, %s176, %s177
      %p181 = pneg %p175
      %p182 = scmp.eq.s32.totalorder %s20, 2
      %p183 = por %p181, %p182
      %p184 = scmp.ne.s32.totalorder %s176, %s179
      %p185 = scmp.eq.s32.totalorder %s20, 0
      %p186 = por %p184, %p185
      %p187 = scmp.ne.s32.totalorder %s176, %s179
      %p188 = scmp.eq.s32.totalorder %s25, 2
      %p189 = por %p187, %p188
      %p190 = scmp.ne.s32.totalorder %s179, %s180
      %p191 = scmp.eq.s32.totalorder %s25, 0
      %p192 = por %p190, %p191
      %p193 = scmp.ne.s32.totalorder %s179, %s180
      %p194 = scmp.eq.s32.totalorder %s26, 2
      %p195 = por %p193, %p194
      %p197 = scmp.ne.s32.totalorder %s180, %s196
      %p198 = scmp.eq.s32.totalorder %s26, 0
      %p199 = por %p197, %p198
      %p200 = scmp.le.s32.totalorder 1, %s20
      %p201 = scmp.lt.s32.totalorder %s20, 4
      %p202 = pnand %p200, %p201
      %p203 = pneg %p202
      // Predicated region
      $region9: #{tree_lstm_cell.1} parent=5 // pred_check
        _
      $region10: #{tree_lstm_cell.1} parent=5 // pred_check_branch
        %205 = sbr.rel (%p202) target = $region12
      $region11: #{tree_lstm_cell.1} parent=5 // pred_region
        %s206 = ssub.s32 %s20, 1
        // Predicated region
        $region13: #{tree_lstm_cell.1} parent=11 // pred_check
          %p207 = pneg %p119
        $region14: #{tree_lstm_cell.1} parent=11 // pred_check_branch
          %209 = sbr.rel (%p207) target = $region16
        $region15: #{tree_lstm_cell.1} parent=11 // pred_region
          %s211 = ssub.s32 12800, 12800
          %212 = vsyncadd [#allocation3], %s211
          %s213 = sshll.u32 [#allocation2], 4
          %s214 = int_to_ptr.vmem [resolvable:$true] %s213
          %219 = dma.hbm_to_vmem [thread:$0]  %s3, 12800, %s214, [#allocation3], 320, 320, 20
        $region16: #{tree_lstm_cell.1} parent=11 // pred_fallthru
          _
        // Predicated region
        $region17: #{tree_lstm_cell.1} parent=11 // pred_check
          %p220 = pneg %p140
        $region18: #{tree_lstm_cell.1} parent=11 // pred_check_branch
          %222 = sbr.rel (%p220) target = $region20
        $region19: #{tree_lstm_cell.1} parent=11 // pred_region
          _
        $region20: #{tree_lstm_cell.1} parent=11 // pred_fallthru
          _
      $region12: #{tree_lstm_cell.1} parent=5 // pred_fallthru
        _
      %p223 = scmp.lt.s32.totalorder %s20, 3
      // Predicated region
      $region21: #{tree_lstm_cell.1} parent=5 // pred_check
        %p224 = pneg %p223
      $region22: #{tree_lstm_cell.1} parent=5 // pred_check_branch
        %226 = sbr.rel (%p224) target = $region24
      $region23: #{tree_lstm_cell.1} parent=5 // pred_region
        // Predicated region
        $region25: #{tree_lstm_cell.1} parent=23 // pred_check
          %p227 = pneg %p40
        $region26: #{tree_lstm_cell.1} parent=23 // pred_check_branch
          %229 = sbr.rel (%p227) target = $region28
        $region27: #{tree_lstm_cell.1} parent=23 // pred_region
          %p230 = scmp.lt.s32.totalorder %s20, 2
          %s231 = scalar_select %p230, %s20, 2
          %s232 = smul.addr %s231, 3
          %s233 = smul.addr %s232, 8
          %s234 = scalar_lea.vmem %s0, %s233
        $region28: #{tree_lstm_cell.1} parent=23 // pred_fallthru
          _
        // Predicated region
        $region29: #{tree_lstm_cell.1} parent=23 // pred_check
          %p235 = pneg %p66
        $region30: #{tree_lstm_cell.1} parent=23 // pred_check_branch
          %237 = sbr.rel (%p235) target = $region32
        $region31: #{tree_lstm_cell.1} parent=23 // pred_region
          %p238 = scmp.lt.s32.totalorder %s20, 2
          %s239 = scalar_select %p238, %s20, 2
          %s240 = smul.addr %s239, 8
          %s241 = scalar_lea.vmem %s1, %s240
        $region32: #{tree_lstm_cell.1} parent=23 // pred_fallthru
          _
        // Predicated region
        $region33: #{tree_lstm_cell.1} parent=23 // pred_check
          %p242 = pneg %p92
        $region34: #{tree_lstm_cell.1} parent=23 // pred_check_branch
          %244 = sbr.rel (%p242) target = $region36
        $region35: #{tree_lstm_cell.1} parent=23 // pred_region
          %p245 = scmp.lt.s32.totalorder %s20, 2
          %s246 = scalar_select %p245, %s20, 2
          %s247 = smul.addr %s246, 8
          %s248 = scalar_lea.vmem %s2, %s247
        $region36: #{tree_lstm_cell.1} parent=23 // pred_fallthru
          _
      $region24: #{tree_lstm_cell.1} parent=5 // pred_fallthru
        _
      %p249 = scmp.le.s32.totalorder 1, %s20
      %p250 = scmp.lt.s32.totalorder %s20, 4
      %p251 = pnand %p249, %p250
      %p252 = pneg %p251
      // Predicated region
      $region37: #{tree_lstm_cell.1} parent=5 // pred_check
        _
      $region38: #{tree_lstm_cell.1} parent=5 // pred_check_branch
        %254 = sbr.rel (%p251) target = $region40
      $region39: #{tree_lstm_cell.1} parent=5 // pred_region
        %s255 = ssub.s32 %s20, 1
        // Predicated region
        $region41: #{tree_lstm_cell.1} parent=39 // pred_check
          %p256 = pneg %p119
        $region42: #{tree_lstm_cell.1} parent=39 // pred_check_branch
          %258 = sbr.rel (%p256) target = $region44
        $region43: #{tree_lstm_cell.1} parent=39 // pred_region
          %259 = dma.done [#allocation3], 12800
        $region44: #{tree_lstm_cell.1} parent=39 // pred_fallthru
          _
        %p260 = scmp.lt.s32.totalorder %s25, 2
        %s261 = scalar_select %p260, %s25, 2
        %s262 = smul.addr %s261, 3
        %s263 = smul.addr %s262, 8
        %s264 = scalar_lea.vmem %s0, %s263
        %p265 = pneg %p46
        %p266 = pneg %p43
        %p267 = scmp.lt.s32.totalorder %s25, 2
        %s268 = scalar_select %p267, %s25, 2
        %s269 = smul.addr %s268, 8
        %s270 = scalar_lea.vmem %s1, %s269
        %p271 = pneg %p72
        %p272 = pneg %p69
        %p273 = scmp.lt.s32.totalorder %s25, 2
        %s274 = scalar_select %p273, %s25, 2
        %s275 = smul.addr %s274, 8
        %s276 = scalar_lea.vmem %s2, %s275
        %p277 = pneg %p98
        %p278 = pneg %p95
        %p279 = pneg %p119
        %p280 = pneg %p116
        %p281 = pneg %p140
        %p282 = pneg %p137
        %p283 = pneg %p166
        %p284 = pneg %p163
        %s285 = sand.u32 %s153, 1
        %s286 = scalar_lea.sflag [#allocation4], %s285
        %s287 = sand.u32 %s153, 1
        %s288 = smul.addr %s287, 8
        %s289 = scalar_lea.vmem [#allocation5], %s288
        %p290 = pneg %p192
        %p291 = pneg %p189
        %s292 = sand.u32 %s179, 1
        %s293 = scalar_lea.sflag [#allocation7], %s292
        %s294 = sand.u32 %s179, 1
        %s295 = smul.addr %s294, 8
        %s296 = scalar_lea.vmem [#allocation6], %s295
        %p297 = scmp.lt.s32.totalorder %s25, 2
        %s298 = scalar_select %p297, %s25, 2
        %s299 = smul.addr %s298, 3
        %s300 = smul.addr %s299, 8
        %s301 = scalar_lea.vmem %s0, %s300
        %p302 = scmp.lt.s32.totalorder %s25, 2
        %s303 = scalar_select %p302, %s25, 2
        %s304 = smul.addr %s303, 8
        %s305 = scalar_lea.vmem %s1, %s304
        %p306 = scmp.lt.s32.totalorder %s25, 2
        %s307 = scalar_select %p306, %s25, 2
        %s308 = smul.addr %s307, 8
        %s309 = scalar_lea.vmem %s2, %s308
        %v311 = vld [vmem:[%s301] sm:$0xff]
        %v312 = vld [vmem:[%s301 + $0x8] sm:$0xff]
        %v313 = vld [vmem:[%s301 + $0x10] sm:$0xff]
        %v314 = vpack.c.bf16 %v311, %v311
        %v315 = vpack.c.bf16 %v312, %v312
        %v316 = vpack.c.bf16 %v313, %v313
        %v317 = vld [vmem:[#allocation2] sm:$0xff]
        %v318 = vld [vmem:[#allocation2 + $0x8] sm:$0xff]
        %v319 = vld [vmem:[#allocation2 + $0x10] sm:$0xf]
        %v320 = vld [vmem:[#allocation2 + $0x14] sm:$0xff]
        %v321 = vld [vmem:[#allocation2 + $0x1c] sm:$0xff]
        %v322 = vld [vmem:[#allocation2 + $0x24] sm:$0xf]
        %v323 = vld [vmem:[#allocation2 + $0x28] sm:$0xff]
        %v324 = vld [vmem:[#allocation2 + $0x30] sm:$0xff]
        %v325 = vld [vmem:[#allocation2 + $0x38] sm:$0xf]
        %v326 = vld [vmem:[#allocation2 + $0x3c] sm:$0xff]
        %v327 = vld [vmem:[#allocation2 + $0x44] sm:$0xff]
        %v328 = vld [vmem:[#allocation2 + $0x4c] sm:$0xf]
        %v329 = vld [vmem:[#allocation2 + $0x50] sm:$0xff]
        %v330 = vld [vmem:[#allocation2 + $0x58] sm:$0xff]
        %v331 = vld [vmem:[#allocation2 + $0x60] sm:$0xf]
        %v332 = vld [vmem:[#allocation2 + $0x64] sm:$0xff]
        %v333 = vld [vmem:[#allocation2 + $0x6c] sm:$0xff]
        %v334 = vld [vmem:[#allocation2 + $0x74] sm:$0xf]
        %v335 = vld [vmem:[#allocation2 + $0x78] sm:$0xff]
        %v336 = vld [vmem:[#allocation2 + $0x80] sm:$0xff]
        %v337 = vld [vmem:[#allocation2 + $0x88] sm:$0xf]
        %v338 = vld [vmem:[#allocation2 + $0x8c] sm:$0xff]
        %v339 = vld [vmem:[#allocation2 + $0x94] sm:$0xff]
        %v340 = vld [vmem:[#allocation2 + $0x9c] sm:$0xf]
        %v341 = vld [vmem:[#allocation2 + $0xa0] sm:$0xff]
        %v342 = vld [vmem:[#allocation2 + $0xa8] sm:$0xff]
        %v343 = vld [vmem:[#allocation2 + $0xb0] sm:$0xf]
        %v344 = vld [vmem:[#allocation2 + $0xb4] sm:$0xff]
        %v345 = vld [vmem:[#allocation2 + $0xbc] sm:$0xff]
        %v346 = vld [vmem:[#allocation2 + $0xc4] sm:$0xf]
        %v347 = vld [vmem:[#allocation2 + $0xc8] sm:$0xff]
        %v348 = vld [vmem:[#allocation2 + $0xd0] sm:$0xff]
        %v349 = vld [vmem:[#allocation2 + $0xd8] sm:$0xf]
        %v350 = vld [vmem:[#allocation2 + $0xdc] sm:$0xff]
        %v351 = vld [vmem:[#allocation2 + $0xe4] sm:$0xff]
        %v352 = vld [vmem:[#allocation2 + $0xec] sm:$0xf]
        %v353 = vld [vmem:[#allocation2 + $0xf0] sm:$0xff]
        %v354 = vld [vmem:[#allocation2 + $0xf8] sm:$0xff]
        %v355 = vld [vmem:[#allocation2 + $0x100] sm:$0xf]
        %v356 = vld [vmem:[#allocation2 + $0x104] sm:$0xff]
        %v357 = vld [vmem:[#allocation2 + $0x10c] sm:$0xff]
        %v358 = vld [vmem:[#allocation2 + $0x114] sm:$0xf]
        %v359 = vld [vmem:[#allocation2 + $0x118] sm:$0xff]
        %v360 = vld [vmem:[#allocation2 + $0x120] sm:$0xff]
        %v361 = vld [vmem:[#allocation2 + $0x128] sm:$0xf]
        %v362 = vld [vmem:[#allocation2 + $0x12c] sm:$0xff]
        %v363 = vld [vmem:[#allocation2 + $0x134] sm:$0xff]
        %v364 = vld [vmem:[#allocation2 + $0x13c] sm:$0xf]
        %v365 = vld [vmem:[#allocation2 + $0x140] sm:$0xff]
        %v366 = vld [vmem:[#allocation2 + $0x148] sm:$0xff]
        %v367 = vld [vmem:[#allocation2 + $0x150] sm:$0xf]
        %v368 = vld [vmem:[#allocation2 + $0x154] sm:$0xff]
        %v369 = vld [vmem:[#allocation2 + $0x15c] sm:$0xff]
        %v370 = vld [vmem:[#allocation2 + $0x164] sm:$0xf]
        %v371 = vld [vmem:[#allocation2 + $0x168] sm:$0xff]
        %v372 = vld [vmem:[#allocation2 + $0x170] sm:$0xff]
        %v373 = vld [vmem:[#allocation2 + $0x178] sm:$0xf]
        %v374 = vld [vmem:[#allocation2 + $0x17c] sm:$0xff]
        %v375 = vld [vmem:[#allocation2 + $0x184] sm:$0xff]
        %v376 = vld [vmem:[#allocation2 + $0x18c] sm:$0xf]
        %v377 = vld [vmem:[#allocation2 + $0x190] sm:$0xff]
        %v378 = vld [vmem:[#allocation2 + $0x198] sm:$0xff]
        %v379 = vld [vmem:[#allocation2 + $0x1a0] sm:$0xf]
        %v380 = vld [vmem:[#allocation2 + $0x1a4] sm:$0xff]
        %v381 = vld [vmem:[#allocation2 + $0x1ac] sm:$0xff]
        %v382 = vld [vmem:[#allocation2 + $0x1b4] sm:$0xf]
        %v383 = vld [vmem:[#allocation2 + $0x1b8] sm:$0xff]
        %v384 = vld [vmem:[#allocation2 + $0x1c0] sm:$0xff]
        %v385 = vld [vmem:[#allocation2 + $0x1c8] sm:$0xf]
        %v386 = vld [vmem:[#allocation2 + $0x1cc] sm:$0xff]
        %v387 = vld [vmem:[#allocation2 + $0x1d4] sm:$0xff]
        %v388 = vld [vmem:[#allocation2 + $0x1dc] sm:$0xf]
        %v389 = vld [vmem:[#allocation2 + $0x1e0] sm:$0xff]
        %v390 = vld [vmem:[#allocation2 + $0x1e8] sm:$0xff]
        %v391 = vld [vmem:[#allocation2 + $0x1f0] sm:$0xf]
        %v392 = vld [vmem:[#allocation2 + $0x1f4] sm:$0xff]
        %v393 = vld [vmem:[#allocation2 + $0x1fc] sm:$0xff]
        %v394 = vld [vmem:[#allocation2 + $0x204] sm:$0xf]
        %v395 = vld [vmem:[#allocation2 + $0x208] sm:$0xff]
        %v396 = vld [vmem:[#allocation2 + $0x210] sm:$0xff]
        %v397 = vld [vmem:[#allocation2 + $0x218] sm:$0xf]
        %v398 = vld [vmem:[#allocation2 + $0x21c] sm:$0xff]
        %v399 = vld [vmem:[#allocation2 + $0x224] sm:$0xff]
        %v400 = vld [vmem:[#allocation2 + $0x22c] sm:$0xf]
        %v401 = vld [vmem:[#allocation2 + $0x230] sm:$0xff]
        %v402 = vld [vmem:[#allocation2 + $0x238] sm:$0xff]
        %v403 = vld [vmem:[#allocation2 + $0x240] sm:$0xf]
        %v404 = vld [vmem:[#allocation2 + $0x244] sm:$0xff]
        %v405 = vld [vmem:[#allocation2 + $0x24c] sm:$0xff]
        %v406 = vld [vmem:[#allocation2 + $0x254] sm:$0xf]
        %v407 = vld [vmem:[#allocation2 + $0x258] sm:$0xff]
        %v408 = vld [vmem:[#allocation2 + $0x260] sm:$0xff]
        %v409 = vld [vmem:[#allocation2 + $0x268] sm:$0xf]
        %v410 = vld [vmem:[#allocation2 + $0x26c] sm:$0xff]
        %v411 = vld [vmem:[#allocation2 + $0x274] sm:$0xff]
        %v412 = vld [vmem:[#allocation2 + $0x27c] sm:$0xf]
        %v413 = vld [vmem:[#allocation2 + $0x280] sm:$0xff]
        %v414 = vld [vmem:[#allocation2 + $0x288] sm:$0xff]
        %v415 = vld [vmem:[#allocation2 + $0x290] sm:$0xf]
        %v416 = vld [vmem:[#allocation2 + $0x294] sm:$0xff]
        %v417 = vld [vmem:[#allocation2 + $0x29c] sm:$0xff]
        %v418 = vld [vmem:[#allocation2 + $0x2a4] sm:$0xf]
        %v419 = vld [vmem:[#allocation2 + $0x2a8] sm:$0xff]
        %v420 = vld [vmem:[#allocation2 + $0x2b0] sm:$0xff]
        %v421 = vld [vmem:[#allocation2 + $0x2b8] sm:$0xf]
        %v422 = vld [vmem:[#allocation2 + $0x2bc] sm:$0xff]
        %v423 = vld [vmem:[#allocation2 + $0x2c4] sm:$0xff]
        %v424 = vld [vmem:[#allocation2 + $0x2cc] sm:$0xf]
        %v425 = vld [vmem:[#allocation2 + $0x2d0] sm:$0xff]
        %v426 = vld [vmem:[#allocation2 + $0x2d8] sm:$0xff]
        %v427 = vld [vmem:[#allocation2 + $0x2e0] sm:$0xf]
        %v428 = vld [vmem:[#allocation2 + $0x2e4] sm:$0xff]
        %v429 = vld [vmem:[#allocation2 + $0x2ec] sm:$0xff]
        %v430 = vld [vmem:[#allocation2 + $0x2f4] sm:$0xf]
        %v431 = vld [vmem:[#allocation2 + $0x2f8] sm:$0xff]
        %v432 = vld [vmem:[#allocation2 + $0x300] sm:$0xff]
        %v433 = vld [vmem:[#allocation2 + $0x308] sm:$0xf]
        %v434 = vld [vmem:[#allocation2 + $0x30c] sm:$0xff]
        %v435 = vld [vmem:[#allocation2 + $0x314] sm:$0xff]
        %v436 = vld [vmem:[#allocation2 + $0x31c] sm:$0xf]
        %v437 = vld [vmem:[%s4] sm:$0x1f]
        %v439 = vlaneseq
        %v440 = vshrl.u32 %v439, 7
        %v441 = vsub.s32 0, %v440
        %v442 = vrot.slane %v437, %v441
        %v443 = vlaneseq
        %v444 = vshrl.u32 %v443, 7
        %v445 = vsub.s32 1, %v444
        %v446 = vrot.slane %v437, %v445
        %v447 = vlaneseq
        %v448 = vshrl.u32 %v447, 7
        %v449 = vsub.s32 2, %v448
        %v450 = vrot.slane %v437, %v449
        %v451 = vlaneseq
        %v452 = vshrl.u32 %v451, 7
        %v453 = vsub.s32 3, %v452
        %v454 = vrot.slane %v437, %v453
        %v455 = vlaneseq
        %v456 = vshrl.u32 %v455, 7
        %v457 = vsub.s32 4, %v456
        %v458 = vrot.slane %v437, %v457
        %v584 = vunpack.c.l.b16 %v317
        %v585 = vunpack.c.h.b16 %v317
        %v586 = vunpack.c.l.b16 %v318
        %v587 = vunpack.c.h.b16 %v318
        %v588 = vunpack.c.l.b16 %v319
        %v589 = vunpack.c.l.b16 %v320
        %v590 = vunpack.c.h.b16 %v320
        %v591 = vunpack.c.l.b16 %v321
        %v592 = vunpack.c.h.b16 %v321
        %v593 = vunpack.c.l.b16 %v322
        %v594 = vunpack.c.l.b16 %v323
        %v595 = vunpack.c.h.b16 %v323
        %v596 = vunpack.c.l.b16 %v324
        %v597 = vunpack.c.h.b16 %v324
        %v598 = vunpack.c.l.b16 %v325
        %v599 = vunpack.c.l.b16 %v326
        %v600 = vunpack.c.h.b16 %v326
        %v601 = vunpack.c.l.b16 %v327
        %v602 = vunpack.c.h.b16 %v327
        %v603 = vunpack.c.l.b16 %v328
        %v604 = vunpack.c.l.b16 %v329
        %v605 = vunpack.c.h.b16 %v329
        %v606 = vunpack.c.l.b16 %v330
        %v607 = vunpack.c.h.b16 %v330
        %v608 = vunpack.c.l.b16 %v331
        %v609 = vunpack.c.l.b16 %v332
        %v610 = vunpack.c.h.b16 %v332
        %v611 = vunpack.c.l.b16 %v333
        %v612 = vunpack.c.h.b16 %v333
        %v613 = vunpack.c.l.b16 %v334
        %v614 = vunpack.c.l.b16 %v335
        %v615 = vunpack.c.h.b16 %v335
        %v616 = vunpack.c.l.b16 %v336
        %v617 = vunpack.c.h.b16 %v336
        %v618 = vunpack.c.l.b16 %v337
        %v619 = vunpack.c.l.b16 %v338
        %v620 = vunpack.c.h.b16 %v338
        %v621 = vunpack.c.l.b16 %v339
        %v622 = vunpack.c.h.b16 %v339
        %v623 = vunpack.c.l.b16 %v340
        %v624 = vunpack.c.l.b16 %v341
        %v625 = vunpack.c.h.b16 %v341
        %v626 = vunpack.c.l.b16 %v342
        %v627 = vunpack.c.h.b16 %v342
        %v628 = vunpack.c.l.b16 %v343
        %v629 = vunpack.c.l.b16 %v344
        %v630 = vunpack.c.h.b16 %v344
        %v631 = vunpack.c.l.b16 %v345
        %v632 = vunpack.c.h.b16 %v345
        %v633 = vunpack.c.l.b16 %v346
        %v634 = vunpack.c.l.b16 %v347
        %v635 = vunpack.c.h.b16 %v347
        %v636 = vunpack.c.l.b16 %v348
        %v637 = vunpack.c.h.b16 %v348
        %v638 = vunpack.c.l.b16 %v349
        %v639 = vunpack.c.l.b16 %v350
        %v640 = vunpack.c.h.b16 %v350
        %v641 = vunpack.c.l.b16 %v351
        %v642 = vunpack.c.h.b16 %v351
        %v643 = vunpack.c.l.b16 %v352
        %v644 = vunpack.c.l.b16 %v353
        %v645 = vunpack.c.h.b16 %v353
        %v646 = vunpack.c.l.b16 %v354
        %v647 = vunpack.c.h.b16 %v354
        %v648 = vunpack.c.l.b16 %v355
        %v649 = vunpack.c.l.b16 %v356
        %v650 = vunpack.c.h.b16 %v356
        %v651 = vunpack.c.l.b16 %v357
        %v652 = vunpack.c.h.b16 %v357
        %v653 = vunpack.c.l.b16 %v358
        %v654 = vunpack.c.l.b16 %v359
        %v655 = vunpack.c.h.b16 %v359
        %v656 = vunpack.c.l.b16 %v360
        %v657 = vunpack.c.h.b16 %v360
        %v658 = vunpack.c.l.b16 %v361
        %v659 = vunpack.c.l.b16 %v362
        %v660 = vunpack.c.h.b16 %v362
        %v661 = vunpack.c.l.b16 %v363
        %v662 = vunpack.c.h.b16 %v363
        %v663 = vunpack.c.l.b16 %v364
        %v664 = vunpack.c.l.b16 %v365
        %v665 = vunpack.c.h.b16 %v365
        %v666 = vunpack.c.l.b16 %v366
        %v667 = vunpack.c.h.b16 %v366
        %v668 = vunpack.c.l.b16 %v367
        %v669 = vunpack.c.l.b16 %v368
        %v670 = vunpack.c.h.b16 %v368
        %v671 = vunpack.c.l.b16 %v369
        %v672 = vunpack.c.h.b16 %v369
        %v673 = vunpack.c.l.b16 %v370
        %v674 = vunpack.c.l.b16 %v371
        %v675 = vunpack.c.h.b16 %v371
        %v676 = vunpack.c.l.b16 %v372
        %v677 = vunpack.c.h.b16 %v372
        %v678 = vunpack.c.l.b16 %v373
        %v679 = vunpack.c.l.b16 %v374
        %v680 = vunpack.c.h.b16 %v374
        %v681 = vunpack.c.l.b16 %v375
        %v682 = vunpack.c.h.b16 %v375
        %v683 = vunpack.c.l.b16 %v376
        %v684 = vunpack.c.l.b16 %v377
        %v685 = vunpack.c.h.b16 %v377
        %v686 = vunpack.c.l.b16 %v378
        %v687 = vunpack.c.h.b16 %v378
        %v688 = vunpack.c.l.b16 %v379
        %v689 = vunpack.c.l.b16 %v380
        %v690 = vunpack.c.h.b16 %v380
        %v691 = vunpack.c.l.b16 %v381
        %v692 = vunpack.c.h.b16 %v381
        %v693 = vunpack.c.l.b16 %v382
        %v694 = vunpack.c.l.b16 %v383
        %v695 = vunpack.c.h.b16 %v383
        %v696 = vunpack.c.l.b16 %v384
        %v697 = vunpack.c.h.b16 %v384
        %v698 = vunpack.c.l.b16 %v385
        %v699 = vunpack.c.l.b16 %v386
        %v700 = vunpack.c.h.b16 %v386
        %v701 = vunpack.c.l.b16 %v387
        %v702 = vunpack.c.h.b16 %v387
        %v703 = vunpack.c.l.b16 %v388
        %v704 = vunpack.c.l.b16 %v389
        %v705 = vunpack.c.h.b16 %v389
        %v706 = vunpack.c.l.b16 %v390
        %v707 = vunpack.c.h.b16 %v390
        %v708 = vunpack.c.l.b16 %v391
        %v709 = vunpack.c.l.b16 %v392
        %v710 = vunpack.c.h.b16 %v392
        %v711 = vunpack.c.l.b16 %v393
        %v712 = vunpack.c.h.b16 %v393
        %v713 = vunpack.c.l.b16 %v394
        %v714 = vunpack.c.l.b16 %v395
        %v715 = vunpack.c.h.b16 %v395
        %v716 = vunpack.c.l.b16 %v396
        %v717 = vunpack.c.h.b16 %v396
        %v718 = vunpack.c.l.b16 %v397
        %v719 = vunpack.c.l.b16 %v398
        %v720 = vunpack.c.h.b16 %v398
        %v721 = vunpack.c.l.b16 %v399
        %v722 = vunpack.c.h.b16 %v399
        %v723 = vunpack.c.l.b16 %v400
        %v724 = vunpack.c.l.b16 %v401
        %v725 = vunpack.c.h.b16 %v401
        %v726 = vunpack.c.l.b16 %v402
        %v727 = vunpack.c.h.b16 %v402
        %v728 = vunpack.c.l.b16 %v403
        %v729 = vunpack.c.l.b16 %v404
        %v730 = vunpack.c.h.b16 %v404
        %v731 = vunpack.c.l.b16 %v405
        %v732 = vunpack.c.h.b16 %v405
        %v733 = vunpack.c.l.b16 %v406
        %v734 = vunpack.c.l.b16 %v407
        %v735 = vunpack.c.h.b16 %v407
        %v736 = vunpack.c.l.b16 %v408
        %v737 = vunpack.c.h.b16 %v408
        %v738 = vunpack.c.l.b16 %v409
        %v739 = vunpack.c.l.b16 %v410
        %v740 = vunpack.c.h.b16 %v410
        %v741 = vunpack.c.l.b16 %v411
        %v742 = vunpack.c.h.b16 %v411
        %v743 = vunpack.c.l.b16 %v412
        %v744 = vunpack.c.l.b16 %v413
        %v745 = vunpack.c.h.b16 %v413
        %v746 = vunpack.c.l.b16 %v414
        %v747 = vunpack.c.h.b16 %v414
        %v748 = vunpack.c.l.b16 %v415
        %v749 = vunpack.c.l.b16 %v416
        %v750 = vunpack.c.h.b16 %v416
        %v751 = vunpack.c.l.b16 %v417
        %v752 = vunpack.c.h.b16 %v417
        %v753 = vunpack.c.l.b16 %v418
        %v754 = vunpack.c.l.b16 %v419
        %v755 = vunpack.c.h.b16 %v419
        %v756 = vunpack.c.l.b16 %v420
        %v757 = vunpack.c.h.b16 %v420
        %v758 = vunpack.c.l.b16 %v421
        %v759 = vunpack.c.l.b16 %v422
        %v760 = vunpack.c.h.b16 %v422
        %v761 = vunpack.c.l.b16 %v423
        %v762 = vunpack.c.h.b16 %v423
        %v763 = vunpack.c.l.b16 %v424
        %v764 = vunpack.c.l.b16 %v425
        %v765 = vunpack.c.h.b16 %v425
        %v766 = vunpack.c.l.b16 %v426
        %v767 = vunpack.c.h.b16 %v426
        %v768 = vunpack.c.l.b16 %v427
        %v769 = vunpack.c.l.b16 %v428
        %v770 = vunpack.c.h.b16 %v428
        %v771 = vunpack.c.l.b16 %v429
        %v772 = vunpack.c.h.b16 %v429
        %v773 = vunpack.c.l.b16 %v430
        %v774 = vunpack.c.l.b16 %v431
        %v775 = vunpack.c.h.b16 %v431
        %v776 = vunpack.c.l.b16 %v432
        %v777 = vunpack.c.h.b16 %v432
        %v778 = vunpack.c.l.b16 %v433
        %v779 = vunpack.c.l.b16 %v434
        %v780 = vunpack.c.h.b16 %v434
        %v781 = vunpack.c.l.b16 %v435
        %v782 = vunpack.c.h.b16 %v435
        %v783 = vunpack.c.l.b16 %v436
        %v784 = vpack.c.b16 %v589, %v584
        %v785 = vpack.c.b16 %v590, %v585
        %v786 = vpack.c.b16 %v591, %v586
        %v787 = vpack.c.b16 %v592, %v587
        %v788 = vpack.c.b16 %v593, %v588
        %v789 = vpack.c.b16 %v599, %v594
        %v790 = vpack.c.b16 %v600, %v595
        %v791 = vpack.c.b16 %v601, %v596
        %v792 = vpack.c.b16 %v602, %v597
        %v793 = vpack.c.b16 %v603, %v598
        %v794 = vpack.c.b16 %v609, %v604
        %v795 = vpack.c.b16 %v610, %v605
        %v796 = vpack.c.b16 %v611, %v606
        %v797 = vpack.c.b16 %v612, %v607
        %v798 = vpack.c.b16 %v613, %v608
        %v799 = vpack.c.b16 %v619, %v614
        %v800 = vpack.c.b16 %v620, %v615
        %v801 = vpack.c.b16 %v621, %v616
        %v802 = vpack.c.b16 %v622, %v617
        %v803 = vpack.c.b16 %v623, %v618
        %v804 = vpack.c.b16 %v629, %v624
        %v805 = vpack.c.b16 %v630, %v625
        %v806 = vpack.c.b16 %v631, %v626
        %v807 = vpack.c.b16 %v632, %v627
        %v808 = vpack.c.b16 %v633, %v628
        %v809 = vpack.c.b16 %v639, %v634
        %v810 = vpack.c.b16 %v640, %v635
        %v811 = vpack.c.b16 %v641, %v636
        %v812 = vpack.c.b16 %v642, %v637
        %v813 = vpack.c.b16 %v643, %v638
        %v814 = vpack.c.b16 %v649, %v644
        %v815 = vpack.c.b16 %v650, %v645
        %v816 = vpack.c.b16 %v651, %v646
        %v817 = vpack.c.b16 %v652, %v647
        %v818 = vpack.c.b16 %v653, %v648
        %v819 = vpack.c.b16 %v659, %v654
        %v820 = vpack.c.b16 %v660, %v655
        %v821 = vpack.c.b16 %v661, %v656
        %v822 = vpack.c.b16 %v662, %v657
        %v823 = vpack.c.b16 %v663, %v658
        %v824 = vpack.c.b16 %v669, %v664
        %v825 = vpack.c.b16 %v670, %v665
        %v826 = vpack.c.b16 %v671, %v666
        %v827 = vpack.c.b16 %v672, %v667
        %v828 = vpack.c.b16 %v673, %v668
        %v829 = vpack.c.b16 %v679, %v674
        %v830 = vpack.c.b16 %v680, %v675
        %v831 = vpack.c.b16 %v681, %v676
        %v832 = vpack.c.b16 %v682, %v677
        %v833 = vpack.c.b16 %v683, %v678
        %v834 = vpack.c.b16 %v689, %v684
        %v835 = vpack.c.b16 %v690, %v685
        %v836 = vpack.c.b16 %v691, %v686
        %v837 = vpack.c.b16 %v692, %v687
        %v838 = vpack.c.b16 %v693, %v688
        %v839 = vpack.c.b16 %v699, %v694
        %v840 = vpack.c.b16 %v700, %v695
        %v841 = vpack.c.b16 %v701, %v696
        %v842 = vpack.c.b16 %v702, %v697
        %v843 = vpack.c.b16 %v703, %v698
        %v844 = vpack.c.b16 %v709, %v704
        %v845 = vpack.c.b16 %v710, %v705
        %v846 = vpack.c.b16 %v711, %v706
        %v847 = vpack.c.b16 %v712, %v707
        %v848 = vpack.c.b16 %v713, %v708
        %v849 = vpack.c.b16 %v719, %v714
        %v850 = vpack.c.b16 %v720, %v715
        %v851 = vpack.c.b16 %v721, %v716
        %v852 = vpack.c.b16 %v722, %v717
        %v853 = vpack.c.b16 %v723, %v718
        %v854 = vpack.c.b16 %v729, %v724
        %v855 = vpack.c.b16 %v730, %v725
        %v856 = vpack.c.b16 %v731, %v726
        %v857 = vpack.c.b16 %v732, %v727
        %v858 = vpack.c.b16 %v733, %v728
        %v859 = vpack.c.b16 %v739, %v734
        %v860 = vpack.c.b16 %v740, %v735
        %v861 = vpack.c.b16 %v741, %v736
        %v862 = vpack.c.b16 %v742, %v737
        %v863 = vpack.c.b16 %v743, %v738
        %v864 = vpack.c.b16 %v749, %v744
        %v865 = vpack.c.b16 %v750, %v745
        %v866 = vpack.c.b16 %v751, %v746
        %v867 = vpack.c.b16 %v752, %v747
        %v868 = vpack.c.b16 %v753, %v748
        %v869 = vpack.c.b16 %v759, %v754
        %v870 = vpack.c.b16 %v760, %v755
        %v871 = vpack.c.b16 %v761, %v756
        %v872 = vpack.c.b16 %v762, %v757
        %v873 = vpack.c.b16 %v763, %v758
        %v874 = vpack.c.b16 %v769, %v764
        %v875 = vpack.c.b16 %v770, %v765
        %v876 = vpack.c.b16 %v771, %v766
        %v877 = vpack.c.b16 %v772, %v767
        %v878 = vpack.c.b16 %v773, %v768
        %v879 = vpack.c.b16 %v779, %v774
        %v880 = vpack.c.b16 %v780, %v775
        %v881 = vpack.c.b16 %v781, %v776
        %v882 = vpack.c.b16 %v782, %v777
        %v883 = vpack.c.b16 %v783, %v778
        %vm984 = vcmask 523264
        %v986 = vsel %vm984, %v316, 0
        %988 = vmatprep.subr.bf16.mxu0 %v820
        %989 = vmatpush1.bf16.msra.mxu0 %v819
        %990 = vmatprep.subr.bf16.mxu0 %v815
        %991 = vmatpush1.bf16.msra.mxu0 %v814
        %992 = vmatprep.subr.bf16.mxu0 %v810
        %993 = vmatpush1.bf16.msra.mxu0 %v809
        %994 = vmatprep.subr.bf16.mxu0 %v805
        %995 = vmatpush1.bf16.msra.mxu0 %v804
        %996 = vmatprep.subr.bf16.mxu0 %v800
        %997 = vmatpush1.bf16.msra.mxu0 %v799
        %998 = vmatprep.subr.bf16.mxu0 %v795
        %999 = vmatpush1.bf16.msra.mxu0 %v794
        %1000 = vmatprep.subr.bf16.mxu0 %v790
        %1001 = vmatpush1.bf16.msra.mxu0 %v789
        %1002 = vmatprep.subr.bf16.mxu0 %v785
        %1003 = vmatpush1.bf16.msra.mxu0 %v784
        %1004 = vmatprep.subr.bf16.mxu0 %v860
        %1005 = vmatpush2.bf16.msra.mxu0 %v859
        %1006 = vmatprep.subr.bf16.mxu0 %v855
        %1007 = vmatpush2.bf16.msra.mxu0 %v854
        %1008 = vmatprep.subr.bf16.mxu0 %v850
        %1009 = vmatpush2.bf16.msra.mxu0 %v849
        %1010 = vmatprep.subr.bf16.mxu0 %v845
        %1011 = vmatpush2.bf16.msra.mxu0 %v844
        %1012 = vmatprep.subr.bf16.mxu0 %v840
        %1013 = vmatpush2.bf16.msra.mxu0 %v839
        %1014 = vmatprep.subr.bf16.mxu0 %v835
        %1015 = vmatpush2.bf16.msra.mxu0 %v834
        %1016 = vmatprep.subr.bf16.mxu0 %v830
        %1017 = vmatpush2.bf16.msra.mxu0 %v829
        %1018 = vmatprep.subr.bf16.mxu0 %v825
        %1019 = vmatpush2.bf16.msra.mxu0 %v824
        %1020 = vmatprep.mubr.bf16.mxu0 %v315
        %1021 = vmatmul.mubr.bf16.gmra.mxu0 %v314
        %v1022 = vpop.f32.mrf.mxu0
        %v1023 = vadd.f32 %v442, %v1022
        %v1024 = vpop.f32.mrf.mxu0
        %v1025 = vadd.f32 %v446, %v1024
        %v1026 = vpop.f32.mrf.mxu0
        %v1027 = vpop.f32.mrf.mxu0
        %1028 = vdwg.mxu0
        %1029 = vmatprep.subr.bf16.mxu0 0
        %1030 = vmatpush1.bf16.msra.mxu0 0
        %1031 = vmatprep.subr.bf16.mxu0 0
        %1032 = vmatpush1.bf16.msra.mxu0 0
        %1033 = vmatprep.subr.bf16.mxu0 0
        %1034 = vmatpush1.bf16.msra.mxu0 0
        %1035 = vmatprep.subr.bf16.mxu0 0
        %1036 = vmatpush1.bf16.msra.mxu0 0
        %1037 = vmatprep.subr.bf16.mxu0 %v880
        %1038 = vmatpush1.bf16.msra.mxu0 %v879
        %1039 = vmatprep.subr.bf16.mxu0 %v875
        %1040 = vmatpush1.bf16.msra.mxu0 %v874
        %1041 = vmatprep.subr.bf16.mxu0 %v870
        %1042 = vmatpush1.bf16.msra.mxu0 %v869
        %1043 = vmatprep.subr.bf16.mxu0 %v865
        %1044 = vmatpush1.bf16.msra.mxu0 %v864
        %1045 = vmatprep.subr.bf16.mxu0 0
        %1046 = vmatpush2.bf16.msra.mxu0 0
        %1047 = vmatprep.subr.bf16.mxu0 0
        %1048 = vmatpush2.bf16.msra.mxu0 0
        %1049 = vmatprep.subr.bf16.mxu0 0
        %1050 = vmatpush2.bf16.msra.mxu0 0
        %1051 = vmatprep.subr.bf16.mxu0 0
        %1052 = vmatpush2.bf16.msra.mxu0 0
        %1053 = vmatprep.subr.bf16.mxu0 0
        %1054 = vmatpush2.bf16.msra.mxu0 0
        %1055 = vmatprep.subr.bf16.mxu0 0
        %1056 = vmatpush2.bf16.msra.mxu0 0
        %1057 = vmatprep.subr.bf16.mxu0 0
        %1058 = vmatpush2.bf16.msra.mxu0 0
        %1059 = vmatprep.subr.bf16.mxu0 0
        %1060 = vmatpush2.bf16.msra.mxu0 0
        %1061 = vmatprep.mubr.bf16.mxu0 0
        %1062 = vmatmul.mubr.bf16.gmra.mxu0 %v986
        %v1063 = vpop.f32.mrf.mxu0
        %v1064 = vadd.f32 %v1023, %v1063
        %v1065 = vpop.f32.mrf.mxu0
        %v1066 = vadd.f32 %v1025, %v1065
        %v1067 = vpop.f32.mrf.mxu0
        %v1068 = vpop.f32.mrf.mxu0
        %1069 = vdwg.mxu0
        %1070 = vmatprep.subr.bf16.mxu0 %v822
        %1071 = vmatpush1.bf16.msra.mxu0 %v821
        %1072 = vmatprep.subr.bf16.mxu0 %v817
        %1073 = vmatpush1.bf16.msra.mxu0 %v816
        %1074 = vmatprep.subr.bf16.mxu0 %v812
        %1075 = vmatpush1.bf16.msra.mxu0 %v811
        %1076 = vmatprep.subr.bf16.mxu0 %v807
        %1077 = vmatpush1.bf16.msra.mxu0 %v806
        %1078 = vmatprep.subr.bf16.mxu0 %v802
        %1079 = vmatpush1.bf16.msra.mxu0 %v801
        %1080 = vmatprep.subr.bf16.mxu0 %v797
        %1081 = vmatpush1.bf16.msra.mxu0 %v796
        %1082 = vmatprep.subr.bf16.mxu0 %v792
        %1083 = vmatpush1.bf16.msra.mxu0 %v791
        %1084 = vmatprep.subr.bf16.mxu0 %v787
        %1085 = vmatpush1.bf16.msra.mxu0 %v786
        %1086 = vmatprep.subr.bf16.mxu0 %v862
        %1087 = vmatpush2.bf16.msra.mxu0 %v861
        %1088 = vmatprep.subr.bf16.mxu0 %v857
        %1089 = vmatpush2.bf16.msra.mxu0 %v856
        %1090 = vmatprep.subr.bf16.mxu0 %v852
        %1091 = vmatpush2.bf16.msra.mxu0 %v851
        %1092 = vmatprep.subr.bf16.mxu0 %v847
        %1093 = vmatpush2.bf16.msra.mxu0 %v846
        %1094 = vmatprep.subr.bf16.mxu0 %v842
        %1095 = vmatpush2.bf16.msra.mxu0 %v841
        %1096 = vmatprep.subr.bf16.mxu0 %v837
        %1097 = vmatpush2.bf16.msra.mxu0 %v836
        %1098 = vmatprep.subr.bf16.mxu0 %v832
        %1099 = vmatpush2.bf16.msra.mxu0 %v831
        %1100 = vmatprep.subr.bf16.mxu0 %v827
        %1101 = vmatpush2.bf16.msra.mxu0 %v826
        %1102 = vmatprep.mubr.bf16.mxu0 %v315
        %1103 = vmatmul.mubr.bf16.gmra.mxu0 %v314
        %v1104 = vpop.f32.mrf.mxu0
        %v1105 = vadd.f32 %v450, %v1104
        %v1106 = vpop.f32.mrf.mxu0
        %v1107 = vadd.f32 %v454, %v1106
        %v1108 = vpop.f32.mrf.mxu0
        %v1109 = vpop.f32.mrf.mxu0
        %1110 = vdwg.mxu0
        %1111 = vmatprep.subr.bf16.mxu0 0
        %1112 = vmatpush1.bf16.msra.mxu0 0
        %1113 = vmatprep.subr.bf16.mxu0 0
        %1114 = vmatpush1.bf16.msra.mxu0 0
        %1115 = vmatprep.subr.bf16.mxu0 0
        %1116 = vmatpush1.bf16.msra.mxu0 0
        %1117 = vmatprep.subr.bf16.mxu0 0
        %1118 = vmatpush1.bf16.msra.mxu0 0
        %1119 = vmatprep.subr.bf16.mxu0 %v882
        %1120 = vmatpush1.bf16.msra.mxu0 %v881
        %1121 = vmatprep.subr.bf16.mxu0 %v877
        %1122 = vmatpush1.bf16.msra.mxu0 %v876
        %1123 = vmatprep.subr.bf16.mxu0 %v872
        %1124 = vmatpush1.bf16.msra.mxu0 %v871
        %1125 = vmatprep.subr.bf16.mxu0 %v867
        %1126 = vmatpush1.bf16.msra.mxu0 %v866
        %1127 = vmatprep.subr.bf16.mxu0 0
        %1128 = vmatpush2.bf16.msra.mxu0 0
        %1129 = vmatprep.subr.bf16.mxu0 0
        %1130 = vmatpush2.bf16.msra.mxu0 0
        %1131 = vmatprep.subr.bf16.mxu0 0
        %1132 = vmatpush2.bf16.msra.mxu0 0
        %1133 = vmatprep.subr.bf16.mxu0 0
        %1134 = vmatpush2.bf16.msra.mxu0 0
        %1135 = vmatprep.subr.bf16.mxu0 0
        %1136 = vmatpush2.bf16.msra.mxu0 0
        %1137 = vmatprep.subr.bf16.mxu0 0
        %1138 = vmatpush2.bf16.msra.mxu0 0
        %1139 = vmatprep.subr.bf16.mxu0 0
        %1140 = vmatpush2.bf16.msra.mxu0 0
        %1141 = vmatprep.subr.bf16.mxu0 0
        %1142 = vmatpush2.bf16.msra.mxu0 0
        %1143 = vmatprep.mubr.bf16.mxu0 0
        %1144 = vmatmul.mubr.bf16.gmra.mxu0 %v986
        %v1145 = vpop.f32.mrf.mxu0
        %v1146 = vadd.f32 %v1105, %v1145
        %v1147 = vpop.f32.mrf.mxu0
        %v1148 = vadd.f32 %v1107, %v1147
        %v1149 = vpop.f32.mrf.mxu0
        %v1150 = vpop.f32.mrf.mxu0
        %1151 = vdwg.mxu0
        %1152 = vmatprep.subr.bf16.mxu0 0
        %1153 = vmatpush1.bf16.msra.mxu0 %v823
        %1154 = vmatprep.subr.bf16.mxu0 0
        %1155 = vmatpush1.bf16.msra.mxu0 %v818
        %1156 = vmatprep.subr.bf16.mxu0 0
        %1157 = vmatpush1.bf16.msra.mxu0 %v813
        %1158 = vmatprep.subr.bf16.mxu0 0
        %1159 = vmatpush1.bf16.msra.mxu0 %v808
        %1160 = vmatprep.subr.bf16.mxu0 0
        %1161 = vmatpush1.bf16.msra.mxu0 %v803
        %1162 = vmatprep.subr.bf16.mxu0 0
        %1163 = vmatpush1.bf16.msra.mxu0 %v798
        %1164 = vmatprep.subr.bf16.mxu0 0
        %1165 = vmatpush1.bf16.msra.mxu0 %v793
        %1166 = vmatprep.subr.bf16.mxu0 0
        %1167 = vmatpush1.bf16.msra.mxu0 %v788
        %1168 = vmatprep.subr.bf16.mxu0 0
        %1169 = vmatpush2.bf16.msra.mxu0 %v863
        %1170 = vmatprep.subr.bf16.mxu0 0
        %1171 = vmatpush2.bf16.msra.mxu0 %v858
        %1172 = vmatprep.subr.bf16.mxu0 0
        %1173 = vmatpush2.bf16.msra.mxu0 %v853
        %1174 = vmatprep.subr.bf16.mxu0 0
        %1175 = vmatpush2.bf16.msra.mxu0 %v848
        %1176 = vmatprep.subr.bf16.mxu0 0
        %1177 = vmatpush2.bf16.msra.mxu0 %v843
        %1178 = vmatprep.subr.bf16.mxu0 0
        %1179 = vmatpush2.bf16.msra.mxu0 %v838
        %1180 = vmatprep.subr.bf16.mxu0 0
        %1181 = vmatpush2.bf16.msra.mxu0 %v833
        %1182 = vmatprep.subr.bf16.mxu0 0
        %1183 = vmatpush2.bf16.msra.mxu0 %v828
        %1184 = vmatprep.mubr.bf16.mxu0 %v315
        %1185 = vmatmul.mubr.bf16.gmra.mxu0 %v314
        %v1186 = vpop.f32.mrf.mxu0
        %v1187 = vadd.f32 %v458, %v1186
        %v1188 = vpop.f32.mrf.mxu0
        %v1189 = vpop.f32.mrf.mxu0
        %v1190 = vpop.f32.mrf.mxu0
        %1191 = vdwg.mxu0
        %1192 = vmatprep.subr.bf16.mxu0 0
        %1193 = vmatpush1.bf16.msra.mxu0 0
        %1194 = vmatprep.subr.bf16.mxu0 0
        %1195 = vmatpush1.bf16.msra.mxu0 0
        %1196 = vmatprep.subr.bf16.mxu0 0
        %1197 = vmatpush1.bf16.msra.mxu0 0
        %1198 = vmatprep.subr.bf16.mxu0 0
        %1199 = vmatpush1.bf16.msra.mxu0 0
        %1200 = vmatprep.subr.bf16.mxu0 0
        %1201 = vmatpush1.bf16.msra.mxu0 %v883
        %1202 = vmatprep.subr.bf16.mxu0 0
        %1203 = vmatpush1.bf16.msra.mxu0 %v878
        %1204 = vmatprep.subr.bf16.mxu0 0
        %1205 = vmatpush1.bf16.msra.mxu0 %v873
        %1206 = vmatprep.subr.bf16.mxu0 0
        %1207 = vmatpush1.bf16.msra.mxu0 %v868
        %1208 = vmatprep.subr.bf16.mxu0 0
        %1209 = vmatpush2.bf16.msra.mxu0 0
        %1210 = vmatprep.subr.bf16.mxu0 0
        %1211 = vmatpush2.bf16.msra.mxu0 0
        %1212 = vmatprep.subr.bf16.mxu0 0
        %1213 = vmatpush2.bf16.msra.mxu0 0
        %1214 = vmatprep.subr.bf16.mxu0 0
        %1215 = vmatpush2.bf16.msra.mxu0 0
        %1216 = vmatprep.subr.bf16.mxu0 0
        %1217 = vmatpush2.bf16.msra.mxu0 0
        %1218 = vmatprep.subr.bf16.mxu0 0
        %1219 = vmatpush2.bf16.msra.mxu0 0
        %1220 = vmatprep.subr.bf16.mxu0 0
        %1221 = vmatpush2.bf16.msra.mxu0 0
        %1222 = vmatprep.subr.bf16.mxu0 0
        %1223 = vmatpush2.bf16.msra.mxu0 0
        %1224 = vmatprep.mubr.bf16.mxu0 0
        %1225 = vmatmul.mubr.bf16.gmra.mxu0 %v986
        %v1226 = vpop.f32.mrf.mxu0
        %v1227 = vadd.f32 %v1187, %v1226
        %v1228 = vpop.f32.mrf.mxu0
        %v1229 = vpop.f32.mrf.mxu0
        %v1230 = vpop.f32.mrf.mxu0
        %1231 = vdwg.mxu0
        %v1232 = vxor.u32 %v1064, 2147483648
        %v1233 = vxor.u32 %v1066, 2147483648
        %v1234 = vxor.u32 %v1146, 2147483648
        %v1235 = vxor.u32 %v1148, 2147483648
        %v1236 = vmul.f32 %v1232, 1.442695
        %v1237 = vpow.pop %v1236
        %v1238 = vmul.f32 %v1233, 1.442695
        %v1239 = vpow.pop %v1238
        %v1240 = vmul.f32 %v1234, 1.442695
        %v1241 = vpow.pop %v1240
        %v1242 = vmul.f32 %v1235, 1.442695
        %v1243 = vpow.pop %v1242
        %v1244 = vadd.f32 %v1237, 1.0
        %v1245 = vadd.f32 %v1239, 1.0
        %v1246 = vadd.f32 %v1241, 1.0
        %v1247 = vadd.f32 %v1243, 1.0
        %v1248 = vrcp.pop %v1244
        %v1249 = vmul.f32 1.0, %v1248
        %v1250 = vrcp.pop %v1245
        %v1251 = vmul.f32 1.0, %v1250
        %v1252 = vrcp.pop %v1246
        %v1253 = vmul.f32 1.0, %v1252
        %v1254 = vrcp.pop %v1247
        %v1255 = vmul.f32 1.0, %v1254
        %v1256 = vtanh.pop %v1227
        %v1257 = vmul.f32 %v1249, %v1256
        %v1258 = vld [vmem:[%s305] sm:$0xff]
        %v1259 = vmul.f32 %v1251, %v1258
        %v1260 = vadd.f32 %v1257, %v1259
        %v1261 = vld [vmem:[%s309] sm:$0xff]
        %v1262 = vmul.f32 %v1253, %v1261
        %v1263 = vadd.f32 %v1260, %v1262
        %v1264 = vtanh.pop %v1263
        %v1265 = vmul.f32 %v1255, %v1264
        %1266 = vst [vmem:[%s289] sm:$0xff] %v1265
        %1267 = vst [vmem:[%s296] sm:$0xff] %v1263
        %s1268 = sand.u32 %s153, 1
        %s1269 = scalar_lea.sflag [#allocation4], %s1268
        %s1270 = sand.u32 %s153, 1
        %s1271 = smul.addr %s1270, 8
        %s1272 = scalar_lea.vmem [#allocation5], %s1271
        %s1273 = sand.u32 %s179, 1
        %s1274 = scalar_lea.sflag [#allocation7], %s1273
        %s1275 = sand.u32 %s179, 1
        %s1276 = smul.addr %s1275, 8
        %s1277 = scalar_lea.vmem [#allocation6], %s1276
        // Predicated region
        $region45: #{tree_lstm_cell.1} parent=39 // pred_check
          %p1278 = pneg %p163
        $region46: #{tree_lstm_cell.1} parent=39 // pred_check_branch
          %1280 = sbr.rel (%p1278) target = $region48
        $region47: #{tree_lstm_cell.1} parent=39 // pred_region
          %s1282 = ssub.s32 128, 128
          %1283 = vsyncadd %s1269, %s1282
          %s1284 = smul.addr %s25, 128
          %s1285 = scalar_lea.hbm %s5, %s1284
          %s1287 = sshll.u32 %s1272, 4
          %s1288 = int_to_ptr.vmem [resolvable:$true] %s1287
          %1290 = dma.vmem_to_hbm [thread:$0]  %s1288, 128, %s1285, %s1269
        $region48: #{tree_lstm_cell.1} parent=39 // pred_fallthru
          _
        // Predicated region
        $region49: #{tree_lstm_cell.1} parent=39 // pred_check
          %p1291 = pneg %p189
        $region50: #{tree_lstm_cell.1} parent=39 // pred_check_branch
          %1293 = sbr.rel (%p1291) target = $region52
        $region51: #{tree_lstm_cell.1} parent=39 // pred_region
          %s1295 = ssub.s32 128, 128
          %1296 = vsyncadd %s1274, %s1295
          %s1297 = smul.addr %s25, 128
          %s1298 = scalar_lea.hbm %s6, %s1297
          %s1300 = sshll.u32 %s1277, 4
          %s1301 = int_to_ptr.vmem [resolvable:$true] %s1300
          %1303 = dma.vmem_to_hbm [thread:$0]  %s1301, 128, %s1298, %s1274
        $region52: #{tree_lstm_cell.1} parent=39 // pred_fallthru
          _
      $region40: #{tree_lstm_cell.1} parent=5 // pred_fallthru
        _
      %p1304 = scmp.le.s32.totalorder 2, %s20
      // Predicated region
      $region53: #{tree_lstm_cell.1} parent=5 // pred_check
        %p1305 = pneg %p1304
      $region54: #{tree_lstm_cell.1} parent=5 // pred_check_branch
        %1307 = sbr.rel (%p1305) target = $region56
      $region55: #{tree_lstm_cell.1} parent=5 // pred_region
        %s1308 = ssub.s32 %s20, 2
        // Predicated region
        $region57: #{tree_lstm_cell.1} parent=55 // pred_check
          %p1309 = pneg %p169
        $region58: #{tree_lstm_cell.1} parent=55 // pred_check_branch
          %1311 = sbr.rel (%p1309) target = $region60
        $region59: #{tree_lstm_cell.1} parent=55 // pred_region
          %s1312 = sand.u32 %s154, 1
          %s1313 = scalar_lea.sflag [#allocation4], %s1312
          %s1314 = sand.u32 %s154, 1
          %s1315 = smul.addr %s1314, 8
          %s1316 = scalar_lea.vmem [#allocation5], %s1315
          %1317 = dma.done %s1313, 128
        $region60: #{tree_lstm_cell.1} parent=55 // pred_fallthru
          _
        // Predicated region
        $region61: #{tree_lstm_cell.1} parent=55 // pred_check
          %p1318 = pneg %p195
        $region62: #{tree_lstm_cell.1} parent=55 // pred_check_branch
          %1320 = sbr.rel (%p1318) target = $region64
        $region63: #{tree_lstm_cell.1} parent=55 // pred_region
          %s1321 = sand.u32 %s180, 1
          %s1322 = scalar_lea.sflag [#allocation7], %s1321
          %s1323 = sand.u32 %s180, 1
          %s1324 = smul.addr %s1323, 8
          %s1325 = scalar_lea.vmem [#allocation6], %s1324
          %1326 = dma.done %s1322, 128
        $region64: #{tree_lstm_cell.1} parent=55 // pred_fallthru
          _
      $region56: #{tree_lstm_cell.1} parent=5 // pred_fallthru
        _
    $region6: #{tree_lstm_cell.1} parent=1 // loop_footer
      %s24 = sadd.s32 1, %s20
    $region7: #{tree_lstm_cell.1} parent=1 // loop_footer_branch
      %19 = sbr.rel target = $region3
    $region8: #{tree_lstm_cell.1} parent=1 // loop_exit
      _
    %1327 = vsyncpa [#allocation3], 1
    %s1328 = scalar_lea.sflag [#allocation3], 1
    %1329 = vsyncpa %s1328, 1
    %1330 = vsyncpa [#allocation4], 1
    %s1331 = scalar_lea.sflag [#allocation4], 1
    %1332 = vsyncpa %s1331, 1
    %1333 = vsyncpa [#allocation7], 1
    %s1334 = scalar_lea.sflag [#allocation7], 1
    %1335 = vsyncpa %s1334, 1

</llo_original>
